<compile_context>
chip_gen: v7x
topology: tpu7x:2x2x1
jax: 0.10.0
libtpu: 0.0.40
codegen_flags: <defaults>
</compile_context>

<pallas_src>
import functools

import jax
import jax.numpy as jnp
from jax.experimental import pallas as pl
from jax.experimental.pallas import tpu as pltpu

_LANES = 128
_ACC_ROWS = 8          # accumulator kept at vreg shape (8, 128): pure VPU adds
_EPS = 1e-6

# Lanczos (g=7, n=9) coefficients.  Directly accurate for x >= 0.5; for
# 0 < x < 0.5 (alpha > ~2 => 1/(alpha+eps) < 0.5) the direct evaluation keeps
# ~1e-4 absolute accuracy, which is within the f32 / 2e-3 tolerance of this
# loss (no small-x recurrence branch, to keep EUP work minimal).
_LANCZOS_C0 = 0.99999999999980993
_LANCZOS = (
    676.5203681218851,
    -1259.1392167224028,
    771.32342877765313,
    -176.61502916214059,
    12.507343278686905,
    -0.13857109526572012,
    9.9843695780195716e-6,
    1.5056327351493116e-7,
)
_HALF_LOG_2PI = 0.9189385332046727  # 0.5 * log(2*pi)


def _expand_roots(roots):
    """Ascending coefficients of prod_r (z + r)."""
    coeffs = [1.0]
    for r in roots:
        new = [0.0] * (len(coeffs) + 1)
        for k, ck in enumerate(coeffs):
            new[k] += r * ck
            new[k + 1] += ck
        coeffs = new
    return coeffs


def _rational_half(lo, hi):
    """sum_{i=lo..hi} c_i/(z+i) == P(z)/Q(z); returns Horner (descending) coeffs.

    Split into two degree-4 halves so intermediates stay far from f32 overflow
    even for alpha -> 0 (argument ~1e6).
    """
    roots = list(range(lo, hi + 1))
    q = _expand_roots([float(r) for r in roots])
    p = [0.0] * (len(q) - 1)
    for i in roots:
        ci = _LANCZOS[i - 1]
        others = _expand_roots([float(r) for r in roots if r != i])
        for k, ok in enumerate(others):
            p[k] += ci * ok
    return tuple(reversed(p)), tuple(reversed(q))


_P1, _Q1 = _rational_half(1, 4)
_P2, _Q2 = _rational_half(5, 8)


def _horner(z, coeffs):
    acc = coeffs[0] * z + coeffs[1]
    for c in coeffs[2:]:
        acc = acc * z + c
    return acc


def _fast_recip(x):
    """1/x as an approximate EUP reciprocal + one Newton step (VALU slack)."""
    r = pl.reciprocal(x, approx=True)
    return r * (2.0 - x * r)


def _lanczos_parts(x):
    """Pieces of Lanczos lgamma(x), x > 0.

    lgamma(x) = 0.5*log(2*pi) + (x - 0.5)*log(x + 6.5) - (x + 6.5) + log(s(x)).
    Returns ((x - 0.5)*log(x + 6.5), s(x)); the constant and linear '-(x+6.5)'
    pieces are folded analytically by the caller (exact cancellation).
    """
    zm = x - 1.0
    s = (_LANCZOS_C0
         + _horner(zm, _P1) * _fast_recip(_horner(zm, _Q1))
         + _horner(zm, _P2) * _fast_recip(_horner(zm, _Q2)))
    return (zm + 0.5) * jnp.log(zm + 7.5), s


def _nbd_loss_kernel(mu_ref, z_ref, alpha_ref, out_ref, *,
                     blocks_per_split, last_block, n_valid_last,
                     needs_mask, has_phantom):
    c = pl.program_id(0)           # core split ("parallel")
    i = pl.program_id(1)           # reduction step within split ("arbitrary")
    g = c * blocks_per_split + i   # global block index

    @pl.when(i == 0)
    def _():
        out_ref[...] = jnp.zeros_like(out_ref)

    mu = mu_ref[...].astype(jnp.float32)
    z = z_ref[...].astype(jnp.float32)
    alpha = alpha_ref[...].astype(jnp.float32)

    a_eps = alpha + _EPS
    inv_a = _fast_recip(a_eps)
    log1pm = jnp.log(1.0 + alpha * mu)

    m1, s1 = _lanczos_parts(z + inv_a)
    m2, s2 = _lanczos_parts(inv_a)      # evaluated ONCE, weighted by -2 below
    m3, s3 = _lanczos_parts(z + 1.0)

    # lgamma(z+1/a) - 2*lgamma(1/a) - lgamma(z+1), with the "-(x+6.5)" terms
    # folded exactly to (1/a + 14) and the three 0.5*log(2*pi) to -log(2*pi),
    # and the three log(s) fused into two EUP logs (s2^2*s3 stays << f32 max).
    lg_diff = (m1 - 2.0 * m2 - m3
               + jnp.log(s1) - jnp.log(s2 * s2 * s3)
               + inv_a + (14.0 - 2.0 * _HALF_LOG_2PI))

    # z*(log(a+eps)+log(mu+eps)-log(1+a*mu)) - (1/a)*log(1+a*mu), with the two
    # input logs fused into one and the log(1+a*mu) terms combined.
    nll = -(lg_diff
            + z * jnp.log(a_eps * (mu + _EPS))
            - (z + inv_a) * log1pm)

    def accum(vals):
        rows = vals.shape[0]
        if rows > _ACC_ROWS and rows % (4 * _ACC_ROWS) == 0:
            # 2-level tree: 4 interleaved accumulation chains (shorter serial
            # VALU dependency, slightly better summation accuracy).
            part = jnp.sum(vals.reshape(-1, 4 * _ACC_ROWS, _LANES), axis=0)
            out_ref[...] += jnp.sum(part.reshape(4, _ACC_ROWS, _LANES), axis=0)
        else:
            out_ref[...] += jnp.sum(vals.reshape(-1, _ACC_ROWS, _LANES), axis=0)

    if needs_mask:
        @pl.when(g < last_block)
        def _():
            accum(nll)

        @pl.when(g == last_block)
        def _():
            # Tail mask only on the last real block (block-local index, always
            # fits int32).  jnp.where is a lane SELECT, so non-finite garbage
            # in padded / partial-block lanes cannot leak into kept lanes.
            rows = jax.lax.broadcasted_iota(jnp.int32, nll.shape, 0)
            lanes = jax.lax.broadcasted_iota(jnp.int32, nll.shape, 1)
            in_blk = rows * _LANES + lanes
            accum(jnp.where(in_blk < n_valid_last, nll, 0.0))
    elif has_phantom:
        @pl.when(g <= last_block)
        def _():
            accum(nll)
    else:
        accum(nll)


def _default_num_splits():
    # Two TensorCores per chip only on v7x; on v5e/v6e a "parallel" split is a
    # pure-overhead serial re-partition (phantom clamp + extra accumulator).
    try:
        kind = jax.devices()[0].device_kind.lower()
    except Exception:
        return 1
    return 2 if "v7" in kind else 1


def negative_binomial_distribution_loss(mu, z, alpha, *,
                                        tile_rows=2048, num_splits=None):
    """Mean negative-binomial NLL, matching the PyTorch module semantics."""
    # TODO(synk): if alpha (or mu/z) is a scalar/low-rank broadcast in real use,
    # pass it unexpanded (SMEM scalar / constant index_map) instead of
    # materializing a full-size broadcast here (main lever on v5e's HBM roofline).
    mu, z, alpha = jnp.broadcast_arrays(mu, z, alpha)
    n_total = int(mu.size)
    if n_total == 0:
        return jnp.float32(jnp.nan)

    if num_splits is None:
        num_splits = _default_num_splits()
    num_splits = max(1, int(num_splits))

    def keep_dtype(x):
        # bf16 ingestion halves HBM bytes (kernel upcasts to f32 internally).
        return x.dtype if x.dtype in (jnp.bfloat16, jnp.float32) else jnp.float32

    any_bf16 = any(keep_dtype(x) == jnp.bfloat16 for x in (mu, z, alpha))
    row_align = 16 if any_bf16 else 8            # sublane packing for bf16

    tile_rows = max(row_align, (int(tile_rows) // row_align) * row_align)
    n_rows = pl.cdiv(n_total, _LANES)

    if n_rows <= tile_rows:
        # Single block covering everything (rounded up to a sublane multiple).
        tile = max(row_align, pl.cdiv(n_rows, row_align) * row_align)
        n_rows_store = tile
        num_splits = 1
    else:
        tile = tile_rows                 # ~2 MiB/input buffer at the default
        n_rows_store = n_rows            # NO tile-multiple padding of the slab

    n_blocks = pl.cdiv(n_rows_store, tile)
    if n_blocks < num_splits:
        num_splits = 1
    bps = pl.cdiv(n_blocks, num_splits)          # blocks per core split
    last_block = n_blocks - 1
    n_valid_last = n_total - last_block * tile * _LANES
    needs_mask = n_valid_last < tile * _LANES
    has_phantom = bps * num_splits != n_blocks   # clamped, skipped in-kernel

    padded = n_rows_store * _LANES

    def prep(x, pad_value):
        flat = x.reshape(-1).astype(keep_dtype(x))
        if padded != n_total:
            # Only the sub-row / small tail is padded (with benign values so the
            # lgamma chain stays finite); 128-divisible sizes do no pad copy.
            flat = jnp.pad(flat, (0, padded - n_total),
                           constant_values=pad_value)
        return flat.reshape(n_rows_store, _LANES)

    if has_phantom:
        def in_map(c, i):
            return (jnp.minimum(c * bps + i, last_block), 0)
    else:
        def in_map(c, i):
            return (c * bps + i, 0)

    in_spec = pl.BlockSpec((tile, _LANES), in_map)
    out_spec = pl.BlockSpec((_ACC_ROWS, _LANES), lambda c, i: (c, 0))

    kernel = functools.partial(
        _nbd_loss_kernel,
        blocks_per_split=bps,
        last_block=last_block,
        n_valid_last=n_valid_last,
        needs_mask=needs_mask,
        has_phantom=has_phantom,
    )

    # VMEM budget: 3 inputs x 2 pipeline buffers x tile (bounded with f32) plus
    # headroom for the full-block elementwise temporaries Mosaic materializes.
    # Capped at 60 MiB so the default tiling stays inside v7x's 64 MiB VMEM
    # (and above v5e's 16 MiB default scoped limit).
    buf_bytes = 3 * 2 * tile * _LANES * 4
    vmem_limit = int(min(buf_bytes + (40 << 20), 60 << 20))

    partial_sums = pl.pallas_call(
        kernel,
        out_shape=jax.ShapeDtypeStruct((num_splits * _ACC_ROWS, _LANES),
                                       jnp.float32),
        grid_spec=pltpu.PrefetchScalarGridSpec(
            num_scalar_prefetch=0,
            grid=(num_splits, bps),
            in_specs=[in_spec, in_spec, in_spec],
            out_specs=out_spec,
        ),
        compiler_params=pltpu.CompilerParams(
            # TODO(synk): on v7x, verify via bundle dump / xprof that the
            # leading "parallel" axis really shards across both TensorCores;
            # if not, switch to pltpu.CORE_PARALLEL or an explicit core_map.
            dimension_semantics=("parallel", "arbitrary"),
            vmem_limit_bytes=vmem_limit,
        ),
    )(prep(mu, 1.0), prep(z, 0.0), prep(alpha, 1.0))

    return jnp.sum(partial_sums) / n_total


def _reference_loss(mu, z, alpha):
    """Pure-JAX reference (uses jax.scipy lgamma) for a sanity check."""
    lgamma = jax.scipy.special.gammaln
    inv_a = 1.0 / (alpha + _EPS)
    log1_am = jnp.log(1.0 + alpha * mu)
    nll = -(
        lgamma(z + inv_a)
        - lgamma(inv_a)
        - lgamma(z + 1.0)
        - lgamma(inv_a)
        + z * (jnp.log(alpha + _EPS) + jnp.log(mu + _EPS) - log1_am)
        - inv_a * log1_am
    )
    return jnp.mean(nll)


if __name__ == "__main__":
    key = jax.random.PRNGKey(0)
    k_mu, k_z, k_a = jax.random.split(key, 3)

    # Primary shape: small NCHW-like tensor (loss is elementwise + mean).
    shape = (2, 4, 16, 16)
    mu = jax.random.uniform(k_mu, shape, jnp.float32, 0.1, 5.0)
    z = jnp.floor(jax.random.uniform(k_z, shape, jnp.float32, 0.0, 10.0))
    alpha = jax.random.uniform(k_a, shape, jnp.float32, 0.05, 1.0)

    loss = jax.block_until_ready(
        negative_binomial_distribution_loss(mu, z, alpha))
    ref = _reference_loss(mu, z, alpha)
    assert jnp.isfinite(loss), "kernel produced non-finite loss"
    assert jnp.allclose(loss, ref, rtol=2e-3, atol=2e-3), (loss, ref)

    # Regression: non-128-divisible size (padded-tail path) + alpha up to 2.
    shape2 = (3, 5, 7)  # 105 elements
    mu2 = jax.random.uniform(k_mu, shape2, jnp.float32, 0.1, 5.0)
    z2 = jnp.floor(jax.random.uniform(k_z, shape2, jnp.float32, 0.0, 10.0))
    a2 = jax.random.uniform(k_a, shape2, jnp.float32, 0.05, 2.0)
    loss2 = jax.block_until_ready(
        negative_binomial_distribution_loss(mu2, z2, a2))
    ref2 = _reference_loss(mu2, z2, a2)
    assert jnp.allclose(loss2, ref2, rtol=2e-3, atol=2e-3), (loss2, ref2)

    # Regression: multi-block grid with a partial (masked) last block.
    shape3 = (2, 1050)  # 2100 elements -> 17 rows of 128
    mu3 = jax.random.uniform(k_mu, shape3, jnp.float32, 0.1, 5.0)
    z3 = jnp.floor(jax.random.uniform(k_z, shape3, jnp.float32, 0.0, 10.0))
    a3 = jax.random.uniform(k_a, shape3, jnp.float32, 0.05, 1.0)
    ref3 = _reference_loss(mu3, z3, a3)
    loss3 = jax.block_until_ready(
        negative_binomial_distribution_loss(mu3, z3, a3, tile_rows=8))
    assert jnp.allclose(loss3, ref3, rtol=2e-3, atol=2e-3), (loss3, ref3)
    # Same inputs, forced 2-way split (exercises the phantom-block clamp).
    loss4 = jax.block_until_ready(
        negative_binomial_distribution_loss(mu3, z3, a3,
                                            tile_rows=8, num_splits=2))
    assert jnp.allclose(loss4, ref3, rtol=2e-3, atol=2e-3), (loss4, ref3)

    # Regression: bf16 ingestion (kernel upcasts to f32 internally).
    mu_b = mu.astype(jnp.bfloat16)
    z_b = z.astype(jnp.bfloat16)
    a_b = alpha.astype(jnp.bfloat16)
    loss5 = jax.block_until_ready(
        negative_binomial_distribution_loss(mu_b, z_b, a_b))
    ref5 = _reference_loss(mu_b.astype(jnp.float32), z_b.astype(jnp.float32),
                           a_b.astype(jnp.float32))
    assert jnp.allclose(loss5, ref5, rtol=2e-3, atol=2e-3), (loss5, ref5)

    print("KERNEL_OK")
</pallas_src>

<mosaic_0001>
module attributes {stable_mosaic.version = 11 : i64} {
  func.func @_nbd_loss_kernel(%arg0: i32, %arg1: i32, %arg2: memref<16x128xf32, #tpu.memory_space<vmem>>, %arg3: memref<16x128xf32, #tpu.memory_space<vmem>>, %arg4: memref<16x128xf32, #tpu.memory_space<vmem>>, %arg5: memref<8x128xf32, #tpu.memory_space<vmem>>) attributes {dimension_semantics = [#tpu.dimension_semantics<parallel>, #tpu.dimension_semantics<arbitrary>], iteration_bounds = array<i64: 1, 1>, scalar_prefetch = 0 : i64, scratch_operands = 0 : i64, tpu.core_type = #tpu.core_type<tc>, window_params = [{transform_indices = @transform_0, window_bounds = array<i64: 16, 128>}, {transform_indices = @transform_1, window_bounds = array<i64: 16, 128>}, {transform_indices = @transform_2, window_bounds = array<i64: 16, 128>}, {transform_indices = @transform_3, window_bounds = array<i64: 8, 128>}]} {
    %c0_i32 = arith.constant 0 : i32
    %0 = arith.cmpi eq, %arg1, %c0_i32 : i32
    %1 = arith.extui %0 : i1 to i32
    %c0_i32_0 = arith.constant 0 : i32
    %2 = arith.cmpi ne, %1, %c0_i32_0 : i32
    scf.if %2 {
      %cst_90 = arith.constant 0.000000e+00 : f32
      %256 = vector.broadcast %cst_90 : f32 to vector<8x128xf32>
      %c0_91 = arith.constant 0 : index
      %c0_92 = arith.constant 0 : index
      %257 = vector.load %arg5[%c0_91, %c0_92] : memref<8x128xf32, #tpu.memory_space<vmem>>, vector<8x128xf32>
      tpu.vector_store %arg5[%c0_91, %c0_92], %256 {strides = array<i32>} : memref<8x128xf32, #tpu.memory_space<vmem>>, vector<8x128xf32>,
    } else {
    }
    %c0 = arith.constant 0 : index
    %c0_1 = arith.constant 0 : index
    %3 = vector.load %arg2[%c0, %c0_1] : memref<16x128xf32, #tpu.memory_space<vmem>>, vector<16x128xf32>
    %c0_2 = arith.constant 0 : index
    %c0_3 = arith.constant 0 : index
    %4 = vector.load %arg3[%c0_2, %c0_3] : memref<16x128xf32, #tpu.memory_space<vmem>>, vector<16x128xf32>
    %c0_4 = arith.constant 0 : index
    %c0_5 = arith.constant 0 : index
    %5 = vector.load %arg4[%c0_4, %c0_5] : memref<16x128xf32, #tpu.memory_space<vmem>>, vector<16x128xf32>
    %cst = arith.constant 9.99999997E-7 : f32
    %6 = vector.broadcast %cst : f32 to vector<16x128xf32>
    %7 = arith.addf %5, %6 : vector<16x128xf32>
    %8 = tpu.reciprocal %7 {approx = true} : vector<16x128xf32> -> vector<16x128xf32>
    %9 = arith.mulf %7, %8 : vector<16x128xf32>
    %cst_6 = arith.constant 2.000000e+00 : f32
    %10 = vector.broadcast %cst_6 : f32 to vector<16x128xf32>
    %11 = arith.subf %10, %9 : vector<16x128xf32>
    %12 = arith.mulf %8, %11 : vector<16x128xf32>
    %13 = arith.mulf %5, %3 : vector<16x128xf32>
    %cst_7 = arith.constant 1.000000e+00 : f32
    %14 = vector.broadcast %cst_7 : f32 to vector<16x128xf32>
    %15 = arith.addf %14, %13 : vector<16x128xf32>
    %16 = math.log %15 : vector<16x128xf32>
    %17 = arith.addf %4, %12 : vector<16x128xf32>
    %cst_8 = arith.constant 1.000000e+00 : f32
    %18 = vector.broadcast %cst_8 : f32 to vector<16x128xf32>
    %19 = arith.subf %17, %18 : vector<16x128xf32>
    %cst_9 = arith.constant 12.089551 : f32
    %20 = vector.broadcast %cst_9 : f32 to vector<16x128xf32>
    %21 = arith.mulf %20, %19 : vector<16x128xf32>
    %cst_10 = arith.constant 355.143402 : f32
    %22 = vector.broadcast %cst_10 : f32 to vector<16x128xf32>
    %23 = arith.addf %21, %22 : vector<16x128xf32>
    %24 = arith.mulf %23, %19 : vector<16x128xf32>
    %cst_11 = arith.constant 2521.64722 : f32
    %25 = vector.broadcast %cst_11 : f32 to vector<16x128xf32>
    %26 = arith.addf %24, %25 : vector<16x128xf32>
    %27 = arith.mulf %26, %19 : vector<16x128xf32>
    %cst_12 = arith.constant 6237.71533 : f32
    %28 = vector.broadcast %cst_12 : f32 to vector<16x128xf32>
    %29 = arith.addf %27, %28 : vector<16x128xf32>
    %cst_13 = arith.constant 1.000000e+00 : f32
    %30 = vector.broadcast %cst_13 : f32 to vector<16x128xf32>
    %31 = arith.mulf %30, %19 : vector<16x128xf32>
    %cst_14 = arith.constant 1.000000e+01 : f32
    %32 = vector.broadcast %cst_14 : f32 to vector<16x128xf32>
    %33 = arith.addf %31, %32 : vector<16x128xf32>
    %34 = arith.mulf %33, %19 : vector<16x128xf32>
    %cst_15 = arith.constant 3.500000e+01 : f32
    %35 = vector.broadcast %cst_15 : f32 to vector<16x128xf32>
    %36 = arith.addf %34, %35 : vector<16x128xf32>
    %37 = arith.mulf %36, %19 : vector<16x128xf32>
    %cst_16 = arith.constant 5.000000e+01 : f32
    %38 = vector.broadcast %cst_16 : f32 to vector<16x128xf32>
    %39 = arith.addf %37, %38 : vector<16x128xf32>
    %40 = arith.mulf %39, %19 : vector<16x128xf32>
    %cst_17 = arith.constant 2.400000e+01 : f32
    %41 = vector.broadcast %cst_17 : f32 to vector<16x128xf32>
    %42 = arith.addf %40, %41 : vector<16x128xf32>
    %43 = tpu.reciprocal %42 {approx = true} : vector<16x128xf32> -> vector<16x128xf32>
    %44 = arith.mulf %42, %43 : vector<16x128xf32>
    %cst_18 = arith.constant 2.000000e+00 : f32
    %45 = vector.broadcast %cst_18 : f32 to vector<16x128xf32>
    %46 = arith.subf %45, %44 : vector<16x128xf32>
    %47 = arith.mulf %43, %46 : vector<16x128xf32>
    %48 = arith.mulf %29, %47 : vector<16x128xf32>
    %cst_19 = arith.constant 1.000000e+00 : f32
    %49 = vector.broadcast %cst_19 : f32 to vector<16x128xf32>
    %50 = arith.addf %49, %48 : vector<16x128xf32>
    %cst_20 = arith.constant 12.368782 : f32
    %51 = vector.broadcast %cst_20 : f32 to vector<16x128xf32>
    %52 = arith.mulf %51, %19 : vector<16x128xf32>
    %cst_21 = arith.constant 259.882965 : f32
    %53 = vector.broadcast %cst_21 : f32 to vector<16x128xf32>
    %54 = arith.addf %52, %53 : vector<16x128xf32>
    %55 = arith.mulf %54, %19 : vector<16x128xf32>
    %cst_22 = arith.constant 1807.92053 : f32
    %56 = vector.broadcast %cst_22 : f32 to vector<16x128xf32>
    %57 = arith.addf %55, %56 : vector<16x128xf32>
    %58 = arith.mulf %57, %19 : vector<16x128xf32>
    %cst_23 = arith.constant 4.163670e+03 : f32
    %59 = vector.broadcast %cst_23 : f32 to vector<16x128xf32>
    %60 = arith.addf %58, %59 : vector<16x128xf32>
    %cst_24 = arith.constant 1.000000e+00 : f32
    %61 = vector.broadcast %cst_24 : f32 to vector<16x128xf32>
    %62 = arith.mulf %61, %19 : vector<16x128xf32>
    %cst_25 = arith.constant 2.600000e+01 : f32
    %63 = vector.broadcast %cst_25 : f32 to vector<16x128xf32>
    %64 = arith.addf %62, %63 : vector<16x128xf32>
    %65 = arith.mulf %64, %19 : vector<16x128xf32>
    %cst_26 = arith.constant 2.510000e+02 : f32
    %66 = vector.broadcast %cst_26 : f32 to vector<16x128xf32>
    %67 = arith.addf %65, %66 : vector<16x128xf32>
    %68 = arith.mulf %67, %19 : vector<16x128xf32>
    %cst_27 = arith.constant 1.066000e+03 : f32
    %69 = vector.broadcast %cst_27 : f32 to vector<16x128xf32>
    %70 = arith.addf %68, %69 : vector<16x128xf32>
    %71 = arith.mulf %70, %19 : vector<16x128xf32>
    %cst_28 = arith.constant 1.680000e+03 : f32
    %72 = vector.broadcast %cst_28 : f32 to vector<16x128xf32>
    %73 = arith.addf %71, %72 : vector<16x128xf32>
    %74 = tpu.reciprocal %73 {approx = true} : vector<16x128xf32> -> vector<16x128xf32>
    %75 = arith.mulf %73, %74 : vector<16x128xf32>
    %cst_29 = arith.constant 2.000000e+00 : f32
    %76 = vector.broadcast %cst_29 : f32 to vector<16x128xf32>
    %77 = arith.subf %76, %75 : vector<16x128xf32>
    %78 = arith.mulf %74, %77 : vector<16x128xf32>
    %79 = arith.mulf %60, %78 : vector<16x128xf32>
    %80 = arith.addf %50, %79 : vector<16x128xf32>
    %cst_30 = arith.constant 5.000000e-01 : f32
    %81 = vector.broadcast %cst_30 : f32 to vector<16x128xf32>
    %82 = arith.addf %19, %81 : vector<16x128xf32>
    %cst_31 = arith.constant 7.500000e+00 : f32
    %83 = vector.broadcast %cst_31 : f32 to vector<16x128xf32>
    %84 = arith.addf %19, %83 : vector<16x128xf32>
    %85 = math.log %84 : vector<16x128xf32>
    %86 = arith.mulf %82, %85 : vector<16x128xf32>
    %cst_32 = arith.constant 1.000000e+00 : f32
    %87 = vector.broadcast %cst_32 : f32 to vector<16x128xf32>
    %88 = arith.subf %12, %87 : vector<16x128xf32>
    %cst_33 = arith.constant 12.089551 : f32
    %89 = vector.broadcast %cst_33 : f32 to vector<16x128xf32>
    %90 = arith.mulf %89, %88 : vector<16x128xf32>
    %cst_34 = arith.constant 355.143402 : f32
    %91 = vector.broadcast %cst_34 : f32 to vector<16x128xf32>
    %92 = arith.addf %90, %91 : vector<16x128xf32>
    %93 = arith.mulf %92, %88 : vector<16x128xf32>
    %cst_35 = arith.constant 2521.64722 : f32
    %94 = vector.broadcast %cst_35 : f32 to vector<16x128xf32>
    %95 = arith.addf %93, %94 : vector<16x128xf32>
    %96 = arith.mulf %95, %88 : vector<16x128xf32>
    %cst_36 = arith.constant 6237.71533 : f32
    %97 = vector.broadcast %cst_36 : f32 to vector<16x128xf32>
    %98 = arith.addf %96, %97 : vector<16x128xf32>
    %cst_37 = arith.constant 1.000000e+00 : f32
    %99 = vector.broadcast %cst_37 : f32 to vector<16x128xf32>
    %100 = arith.mulf %99, %88 : vector<16x128xf32>
    %cst_38 = arith.constant 1.000000e+01 : f32
    %101 = vector.broadcast %cst_38 : f32 to vector<16x128xf32>
    %102 = arith.addf %100, %101 : vector<16x128xf32>
    %103 = arith.mulf %102, %88 : vector<16x128xf32>
    %cst_39 = arith.constant 3.500000e+01 : f32
    %104 = vector.broadcast %cst_39 : f32 to vector<16x128xf32>
    %105 = arith.addf %103, %104 : vector<16x128xf32>
    %106 = arith.mulf %105, %88 : vector<16x128xf32>
    %cst_40 = arith.constant 5.000000e+01 : f32
    %107 = vector.broadcast %cst_40 : f32 to vector<16x128xf32>
    %108 = arith.addf %106, %107 : vector<16x128xf32>
    %109 = arith.mulf %108, %88 : vector<16x128xf32>
    %cst_41 = arith.constant 2.400000e+01 : f32
    %110 = vector.broadcast %cst_41 : f32 to vector<16x128xf32>
    %111 = arith.addf %109, %110 : vector<16x128xf32>
    %112 = tpu.reciprocal %111 {approx = true} : vector<16x128xf32> -> vector<16x128xf32>
    %113 = arith.mulf %111, %112 : vector<16x128xf32>
    %cst_42 = arith.constant 2.000000e+00 : f32
    %114 = vector.broadcast %cst_42 : f32 to vector<16x128xf32>
    %115 = arith.subf %114, %113 : vector<16x128xf32>
    %116 = arith.mulf %112, %115 : vector<16x128xf32>
    %117 = arith.mulf %98, %116 : vector<16x128xf32>
    %cst_43 = arith.constant 1.000000e+00 : f32
    %118 = vector.broadcast %cst_43 : f32 to vector<16x128xf32>
    %119 = arith.addf %118, %117 : vector<16x128xf32>
    %cst_44 = arith.constant 12.368782 : f32
    %120 = vector.broadcast %cst_44 : f32 to vector<16x128xf32>
    %121 = arith.mulf %120, %88 : vector<16x128xf32>
    %cst_45 = arith.constant 259.882965 : f32
    %122 = vector.broadcast %cst_45 : f32 to vector<16x128xf32>
    %123 = arith.addf %121, %122 : vector<16x128xf32>
    %124 = arith.mulf %123, %88 : vector<16x128xf32>
    %cst_46 = arith.constant 1807.92053 : f32
    %125 = vector.broadcast %cst_46 : f32 to vector<16x128xf32>
    %126 = arith.addf %124, %125 : vector<16x128xf32>
    %127 = arith.mulf %126, %88 : vector<16x128xf32>
    %cst_47 = arith.constant 4.163670e+03 : f32
    %128 = vector.broadcast %cst_47 : f32 to vector<16x128xf32>
    %129 = arith.addf %127, %128 : vector<16x128xf32>
    %cst_48 = arith.constant 1.000000e+00 : f32
    %130 = vector.broadcast %cst_48 : f32 to vector<16x128xf32>
    %131 = arith.mulf %130, %88 : vector<16x128xf32>
    %cst_49 = arith.constant 2.600000e+01 : f32
    %132 = vector.broadcast %cst_49 : f32 to vector<16x128xf32>
    %133 = arith.addf %131, %132 : vector<16x128xf32>
    %134 = arith.mulf %133, %88 : vector<16x128xf32>
    %cst_50 = arith.constant 2.510000e+02 : f32
    %135 = vector.broadcast %cst_50 : f32 to vector<16x128xf32>
    %136 = arith.addf %134, %135 : vector<16x128xf32>
    %137 = arith.mulf %136, %88 : vector<16x128xf32>
    %cst_51 = arith.constant 1.066000e+03 : f32
    %138 = vector.broadcast %cst_51 : f32 to vector<16x128xf32>
    %139 = arith.addf %137, %138 : vector<16x128xf32>
    %140 = arith.mulf %139, %88 : vector<16x128xf32>
    %cst_52 = arith.constant 1.680000e+03 : f32
    %141 = vector.broadcast %cst_52 : f32 to vector<16x128xf32>
    %142 = arith.addf %140, %141 : vector<16x128xf32>
    %143 = tpu.reciprocal %142 {approx = true} : vector<16x128xf32> -> vector<16x128xf32>
    %144 = arith.mulf %142, %143 : vector<16x128xf32>
    %cst_53 = arith.constant 2.000000e+00 : f32
    %145 = vector.broadcast %cst_53 : f32 to vector<16x128xf32>
    %146 = arith.subf %145, %144 : vector<16x128xf32>
    %147 = arith.mulf %143, %146 : vector<16x128xf32>
    %148 = arith.mulf %129, %147 : vector<16x128xf32>
    %149 = arith.addf %119, %148 : vector<16x128xf32>
    %cst_54 = arith.constant 5.000000e-01 : f32
    %150 = vector.broadcast %cst_54 : f32 to vector<16x128xf32>
    %151 = arith.addf %88, %150 : vector<16x128xf32>
    %cst_55 = arith.constant 7.500000e+00 : f32
    %152 = vector.broadcast %cst_55 : f32 to vector<16x128xf32>
    %153 = arith.addf %88, %152 : vector<16x128xf32>
    %154 = math.log %153 : vector<16x128xf32>
    %155 = arith.mulf %151, %154 : vector<16x128xf32>
    %cst_56 = arith.constant 1.000000e+00 : f32
    %156 = vector.broadcast %cst_56 : f32 to vector<16x128xf32>
    %157 = arith.addf %4, %156 : vector<16x128xf32>
    %cst_57 = arith.constant 1.000000e+00 : f32
    %158 = vector.broadcast %cst_57 : f32 to vector<16x128xf32>
    %159 = arith.subf %157, %158 : vector<16x128xf32>
    %cst_58 = arith.constant 12.089551 : f32
    %160 = vector.broadcast %cst_58 : f32 to vector<16x128xf32>
    %161 = arith.mulf %160, %159 : vector<16x128xf32>
    %cst_59 = arith.constant 355.143402 : f32
    %162 = vector.broadcast %cst_59 : f32 to vector<16x128xf32>
    %163 = arith.addf %161, %162 : vector<16x128xf32>
    %164 = arith.mulf %163, %159 : vector<16x128xf32>
    %cst_60 = arith.constant 2521.64722 : f32
    %165 = vector.broadcast %cst_60 : f32 to vector<16x128xf32>
    %166 = arith.addf %164, %165 : vector<16x128xf32>
    %167 = arith.mulf %166, %159 : vector<16x128xf32>
    %cst_61 = arith.constant 6237.71533 : f32
    %168 = vector.broadcast %cst_61 : f32 to vector<16x128xf32>
    %169 = arith.addf %167, %168 : vector<16x128xf32>
    %cst_62 = arith.constant 1.000000e+00 : f32
    %170 = vector.broadcast %cst_62 : f32 to vector<16x128xf32>
    %171 = arith.mulf %170, %159 : vector<16x128xf32>
    %cst_63 = arith.constant 1.000000e+01 : f32
    %172 = vector.broadcast %cst_63 : f32 to vector<16x128xf32>
    %173 = arith.addf %171, %172 : vector<16x128xf32>
    %174 = arith.mulf %173, %159 : vector<16x128xf32>
    %cst_64 = arith.constant 3.500000e+01 : f32
    %175 = vector.broadcast %cst_64 : f32 to vector<16x128xf32>
    %176 = arith.addf %174, %175 : vector<16x128xf32>
    %177 = arith.mulf %176, %159 : vector<16x128xf32>
    %cst_65 = arith.constant 5.000000e+01 : f32
    %178 = vector.broadcast %cst_65 : f32 to vector<16x128xf32>
    %179 = arith.addf %177, %178 : vector<16x128xf32>
    %180 = arith.mulf %179, %159 : vector<16x128xf32>
    %cst_66 = arith.constant 2.400000e+01 : f32
    %181 = vector.broadcast %cst_66 : f32 to vector<16x128xf32>
    %182 = arith.addf %180, %181 : vector<16x128xf32>
    %183 = tpu.reciprocal %182 {approx = true} : vector<16x128xf32> -> vector<16x128xf32>
    %184 = arith.mulf %182, %183 : vector<16x128xf32>
    %cst_67 = arith.constant 2.000000e+00 : f32
    %185 = vector.broadcast %cst_67 : f32 to vector<16x128xf32>
    %186 = arith.subf %185, %184 : vector<16x128xf32>
    %187 = arith.mulf %183, %186 : vector<16x128xf32>
    %188 = arith.mulf %169, %187 : vector<16x128xf32>
    %cst_68 = arith.constant 1.000000e+00 : f32
    %189 = vector.broadcast %cst_68 : f32 to vector<16x128xf32>
    %190 = arith.addf %189, %188 : vector<16x128xf32>
    %cst_69 = arith.constant 12.368782 : f32
    %191 = vector.broadcast %cst_69 : f32 to vector<16x128xf32>
    %192 = arith.mulf %191, %159 : vector<16x128xf32>
    %cst_70 = arith.constant 259.882965 : f32
    %193 = vector.broadcast %cst_70 : f32 to vector<16x128xf32>
    %194 = arith.addf %192, %193 : vector<16x128xf32>
    %195 = arith.mulf %194, %159 : vector<16x128xf32>
    %cst_71 = arith.constant 1807.92053 : f32
    %196 = vector.broadcast %cst_71 : f32 to vector<16x128xf32>
    %197 = arith.addf %195, %196 : vector<16x128xf32>
    %198 = arith.mulf %197, %159 : vector<16x128xf32>
    %cst_72 = arith.constant 4.163670e+03 : f32
    %199 = vector.broadcast %cst_72 : f32 to vector<16x128xf32>
    %200 = arith.addf %198, %199 : vector<16x128xf32>
    %cst_73 = arith.constant 1.000000e+00 : f32
    %201 = vector.broadcast %cst_73 : f32 to vector<16x128xf32>
    %202 = arith.mulf %201, %159 : vector<16x128xf32>
    %cst_74 = arith.constant 2.600000e+01 : f32
    %203 = vector.broadcast %cst_74 : f32 to vector<16x128xf32>
    %204 = arith.addf %202, %203 : vector<16x128xf32>
    %205 = arith.mulf %204, %159 : vector<16x128xf32>
    %cst_75 = arith.constant 2.510000e+02 : f32
    %206 = vector.broadcast %cst_75 : f32 to vector<16x128xf32>
    %207 = arith.addf %205, %206 : vector<16x128xf32>
    %208 = arith.mulf %207, %159 : vector<16x128xf32>
    %cst_76 = arith.constant 1.066000e+03 : f32
    %209 = vector.broadcast %cst_76 : f32 to vector<16x128xf32>
    %210 = arith.addf %208, %209 : vector<16x128xf32>
    %211 = arith.mulf %210, %159 : vector<16x128xf32>
    %cst_77 = arith.constant 1.680000e+03 : f32
    %212 = vector.broadcast %cst_77 : f32 to vector<16x128xf32>
    %213 = arith.addf %211, %212 : vector<16x128xf32>
    %214 = tpu.reciprocal %213 {approx = true} : vector<16x128xf32> -> vector<16x128xf32>
    %215 = arith.mulf %213, %214 : vector<16x128xf32>
    %cst_78 = arith.constant 2.000000e+00 : f32
    %216 = vector.broadcast %cst_78 : f32 to vector<16x128xf32>
    %217 = arith.subf %216, %215 : vector<16x128xf32>
    %218 = arith.mulf %214, %217 : vector<16x128xf32>
    %219 = arith.mulf %200, %218 : vector<16x128xf32>
    %220 = arith.addf %190, %219 : vector<16x128xf32>
    %cst_79 = arith.constant 5.000000e-01 : f32
    %221 = vector.broadcast %cst_79 : f32 to vector<16x128xf32>
    %222 = arith.addf %159, %221 : vector<16x128xf32>
    %cst_80 = arith.constant 7.500000e+00 : f32
    %223 = vector.broadcast %cst_80 : f32 to vector<16x128xf32>
    %224 = arith.addf %159, %223 : vector<16x128xf32>
    %225 = math.log %224 : vector<16x128xf32>
    %226 = arith.mulf %222, %225 : vector<16x128xf32>
    %cst_81 = arith.constant 2.000000e+00 : f32
    %227 = vector.broadcast %cst_81 : f32 to vector<16x128xf32>
    %228 = arith.mulf %227, %155 : vector<16x128xf32>
    %229 = arith.subf %86, %228 : vector<16x128xf32>
    %230 = arith.subf %229, %226 : vector<16x128xf32>
    %231 = math.log %80 : vector<16x128xf32>
    %232 = arith.addf %230, %231 : vector<16x128xf32>
    %233 = arith.mulf %149, %149 : vector<16x128xf32>
    %234 = arith.mulf %233, %220 : vector<16x128xf32>
    %235 = math.log %234 : vector<16x128xf32>
    %236 = arith.subf %232, %235 : vector<16x128xf32>
    %237 = arith.addf %236, %12 : vector<16x128xf32>
    %cst_82 = arith.constant 12.1621227 : f32
    %238 = vector.broadcast %cst_82 : f32 to vector<16x128xf32>
    %239 = arith.addf %237, %238 : vector<16x128xf32>
    %cst_83 = arith.constant 9.99999997E-7 : f32
    %240 = vector.broadcast %cst_83 : f32 to vector<16x128xf32>
    %241 = arith.addf %3, %240 : vector<16x128xf32>
    %242 = arith.mulf %7, %241 : vector<16x128xf32>
    %243 = math.log %242 : vector<16x128xf32>
    %244 = arith.mulf %4, %243 : vector<16x128xf32>
    %245 = arith.addf %239, %244 : vector<16x128xf32>
    %246 = arith.addf %4, %12 : vector<16x128xf32>
    %247 = arith.mulf %246, %16 : vector<16x128xf32>
    %248 = arith.subf %245, %247 : vector<16x128xf32>
    %cst_84 = arith.constant 0.000000e+00 : f32
    %249 = vector.broadcast %cst_84 : f32 to vector<16x128xf32>
    %250 = arith.subf %249, %248 : vector<16x128xf32>
    %c0_85 = arith.constant 0 : index
    %c0_86 = arith.constant 0 : index
    %251 = vector.load %arg5[%c0_85, %c0_86] : memref<8x128xf32, #tpu.memory_space<vmem>>, vector<8x128xf32>
    %252 = vector.shape_cast %250 : vector<16x128xf32> to vector<2x8x128xf32>
    %cst_87 = arith.constant dense<0.000000e+00> : vector<8x128xf32>
    %253 = vector.multi_reduction <add>, %252, %cst_87 [0] : vector<2x8x128xf32> to vector<8x128xf32>
    %254 = arith.addf %251, %253 : vector<8x128xf32>
    %c0_88 = arith.constant 0 : index
    %c0_89 = arith.constant 0 : index
    %255 = vector.load %arg5[%c0_88, %c0_89] : memref<8x128xf32, #tpu.memory_space<vmem>>, vector<8x128xf32>
    tpu.vector_store %arg5[%c0_88, %c0_89], %254 {strides = array<i32>} : memref<8x128xf32, #tpu.memory_space<vmem>>, vector<8x128xf32>,
    return
  }
  func.func @transform_0(%arg0: i32, %arg1: i32) -> (i32, i32) {
    %c1_i32 = arith.constant 1 : i32
    %0 = arith.muli %arg0, %c1_i32 : i32
    %1 = arith.addi %0, %arg1 : i32
    %c0_i32 = arith.constant 0 : i32
    %c0_i32_0 = arith.constant 0 : i32
    return %1, %c0_i32 : i32, i32
  }
  func.func @transform_1(%arg0: i32, %arg1: i32) -> (i32, i32) {
    %c1_i32 = arith.constant 1 : i32
    %0 = arith.muli %arg0, %c1_i32 : i32
    %1 = arith.addi %0, %arg1 : i32
    %c0_i32 = arith.constant 0 : i32
    %c0_i32_0 = arith.constant 0 : i32
    return %1, %c0_i32 : i32, i32
  }
  func.func @transform_2(%arg0: i32, %arg1: i32) -> (i32, i32) {
    %c1_i32 = arith.constant 1 : i32
    %0 = arith.muli %arg0, %c1_i32 : i32
    %1 = arith.addi %0, %arg1 : i32
    %c0_i32 = arith.constant 0 : i32
    %c0_i32_0 = arith.constant 0 : i32
    return %1, %c0_i32 : i32, i32
  }
  func.func @transform_3(%arg0: i32, %arg1: i32) -> (i32, i32) {
    %c0_i32 = arith.constant 0 : i32
    %c0_i32_0 = arith.constant 0 : i32
    return %arg0, %c0_i32 : i32, i32
  }
}

</mosaic_0001>

<llo_original>
// kernel: tpu_custom_call.1
$region0: #{tpu_custom_call.1}
  #allocation0 [shape = 'u32[]', space=smem, size = 0x4, offset = 0x4, fixed_abs, tag = 'smem constant byte address 0x4 - core index']
  #allocation1 [shape = 'u32[144,128]{1,0:T(1,128)}', space=vmem, size = 0x12000, scoped, tag = 'internal scratch']
  %s0 = inlined_call_operand.hbm [shape: f32[16,128], index: 0, kind: input, shape index: {}]
  %s1 = inlined_call_operand.hbm [shape: f32[16,128], index: 1, kind: input, shape index: {}]
  %s2 = inlined_call_operand.hbm [shape: f32[16,128], index: 2, kind: input, shape index: {}]
  %s3 = inlined_call_operand.hbm [shape: f32[8,128], index: 3, kind: output, shape index: {}]
  %s4 = sld [smem:[#allocation0]]
  $region38: #{tpu_custom_call.1} parent=0
    _
  %s6 = ssub.s32 1, %s4
  %s7 = scalar_select 0, %s6, %s4
  $region1: #{tpu_custom_call.1} parent=0
    #allocation2 [shape = 'u8[8192]{0}', space=vmem, size = 0x2000, scoped, tag = 'input window, operand 0, single buffered']
    #allocation3 [shape = 's32[1]{0}', space=sflag, size = 0x4, scoped, tag = 'scoped memory for tpu_custom_call.1']
    #allocation4 [shape = 's32[1]{0}', space=sflag, size = 0x4, scoped, tag = 'scoped memory for tpu_custom_call.1']
    #allocation5 [shape = 'u8[8192]{0}', space=vmem, size = 0x2000, scoped, tag = 'input window, operand 1, single buffered']
    #allocation6 [shape = 's32[1]{0}', space=sflag, size = 0x4, scoped, tag = 'scoped memory for tpu_custom_call.1']
    #allocation7 [shape = 'u8[8192]{0}', space=vmem, size = 0x2000, scoped, tag = 'input window, operand 2, single buffered']
    #allocation8 [shape = 'u8[4096]{0}', space=vmem, size = 0x1000, scoped, tag = 'output window, operand 0, single buffered']
    %8 = vsyncpa [#allocation3], 0
    %9 = vsyncpa [#allocation6], 0
    %10 = vsyncpa [#allocation4], 0
    // Predicated region
    $region2: #{tpu_custom_call.1} parent=1 // pred_check
      _
    $region3: #{tpu_custom_call.1} parent=1 // pred_check_branch
      %12 = sbr.rel (0) target = $region5
    $region4: #{tpu_custom_call.1} parent=1 // pred_region
      %s13 = sadd.s32 0, 0
      %s14 = smul.u32 2, %s13
      %s16 = ssub.s32 256, 256
      %17 = vsyncadd [#allocation3], %s16
      %s18 = smul.addr %s14, 128
      %s19 = scalar_lea.hbm %s0, %s18
      %s20 = sshll.u32 [#allocation2], 4
      %s21 = int_to_ptr.vmem [resolvable:$true] %s20
      %26 = dma.hbm_to_vmem [thread:$0]  %s19, 256, %s21, [#allocation3], 128, 128, 8
    $region5: #{tpu_custom_call.1} parent=1 // pred_fallthru
      _
    // Predicated region
    $region6: #{tpu_custom_call.1} parent=1 // pred_check
      _
    $region7: #{tpu_custom_call.1} parent=1 // pred_check_branch
      %28 = sbr.rel (0) target = $region9
    $region8: #{tpu_custom_call.1} parent=1 // pred_region
      %s29 = sadd.s32 0, 0
      %s30 = smul.u32 2, %s29
      %s32 = ssub.s32 256, 256
      %33 = vsyncadd [#allocation6], %s32
      %s34 = smul.addr %s30, 128
      %s35 = scalar_lea.hbm %s1, %s34
      %s36 = sshll.u32 [#allocation5], 4
      %s37 = int_to_ptr.vmem [resolvable:$true] %s36
      %42 = dma.hbm_to_vmem [thread:$0]  %s35, 256, %s37, [#allocation6], 128, 128, 8
    $region9: #{tpu_custom_call.1} parent=1 // pred_fallthru
      _
    // Predicated region
    $region10: #{tpu_custom_call.1} parent=1 // pred_check
      _
    $region11: #{tpu_custom_call.1} parent=1 // pred_check_branch
      %44 = sbr.rel (0) target = $region13
    $region12: #{tpu_custom_call.1} parent=1 // pred_region
      %s45 = sadd.s32 0, 0
      %s46 = smul.u32 2, %s45
      %s48 = ssub.s32 256, 256
      %49 = vsyncadd [#allocation6], %s48
      %s50 = smul.addr %s46, 128
      %s51 = scalar_lea.hbm %s2, %s50
      %s52 = sshll.u32 [#allocation7], 4
      %s53 = int_to_ptr.vmem [resolvable:$true] %s52
      %58 = dma.hbm_to_vmem [thread:$0]  %s51, 256, %s53, [#allocation6], 128, 128, 8
    $region13: #{tpu_custom_call.1} parent=1 // pred_fallthru
      _
    // Predicated region
    $region14: #{tpu_custom_call.1} parent=1 // pred_check
      _
    $region15: #{tpu_custom_call.1} parent=1 // pred_check_branch
      %60 = sbr.rel (0) target = $region17
    $region16: #{tpu_custom_call.1} parent=1 // pred_region
      %61 = dma.done [#allocation3], 256
    $region17: #{tpu_custom_call.1} parent=1 // pred_fallthru
      _
    // Predicated region
    $region18: #{tpu_custom_call.1} parent=1 // pred_check
      _
    $region19: #{tpu_custom_call.1} parent=1 // pred_check_branch
      %63 = sbr.rel (0) target = $region21
    $region20: #{tpu_custom_call.1} parent=1 // pred_region
      %64 = dma.done [#allocation6], 256
    $region21: #{tpu_custom_call.1} parent=1 // pred_fallthru
      _
    // Predicated region
    $region22: #{tpu_custom_call.1} parent=1 // pred_check
      _
    $region23: #{tpu_custom_call.1} parent=1 // pred_check_branch
      %66 = sbr.rel (0) target = $region25
    $region24: #{tpu_custom_call.1} parent=1 // pred_region
      %67 = dma.done [#allocation6], 256
    $region25: #{tpu_custom_call.1} parent=1 // pred_fallthru
      _
    %s68 = sadd.s32 0, 0
    %s69 = smul.u32 2, %s68
    %s70 = sadd.s32 0, 0
    %s71 = smul.u32 2, %s70
    %s72 = sadd.s32 0, 0
    %s73 = smul.u32 2, %s72
    %p74 = scmp.eq.s32.totalorder 0, 0
    // Predicated region
    $region26: #{tpu_custom_call.1} parent=1 // pred_check
      %p75 = pneg %p74
    $region27: #{tpu_custom_call.1} parent=1 // pred_check_branch
      %77 = sbr.rel (%p75) target = $region29
    $region28: #{tpu_custom_call.1} parent=1 // pred_region
      %78 = vst [vmem:[#allocation8] sm:$0xff] 0.0
    $region29: #{tpu_custom_call.1} parent=1 // pred_fallthru
      _
    %v79 = vld [vmem:[#allocation2] sm:$0xff]
    %v80 = vld [vmem:[#allocation2 + $0x8] sm:$0xff]
    %v81 = vld [vmem:[#allocation5] sm:$0xff]
    %v82 = vld [vmem:[#allocation5 + $0x8] sm:$0xff]
    %v83 = vld [vmem:[#allocation7] sm:$0xff]
    %v84 = vld [vmem:[#allocation7 + $0x8] sm:$0xff]
    %v85 = vadd.f32 %v83, 1e-06
    %v86 = vadd.f32 %v84, 1e-06
    %v87 = vrcp.pop %v85
    %v88 = vrcp.pop %v86
    %v89 = vmul.f32 %v85, %v87
    %v90 = vmul.f32 %v86, %v88
    %v91 = vsub.f32 2.0, %v89
    %v92 = vsub.f32 2.0, %v90
    %v93 = vmul.f32 %v87, %v91
    %v94 = vmul.f32 %v88, %v92
    %v95 = vmul.f32 %v83, %v79
    %v96 = vmul.f32 %v84, %v80
    %v97 = vadd.f32 %v95, 1.0
    %v98 = vadd.f32 %v96, 1.0
    %v99 = vlog2.pop %v97
    %v100 = vmul.f32 %v99, 0.6931472
    %v101 = vlog2.pop %v98
    %v102 = vmul.f32 %v101, 0.6931472
    %v103 = vadd.f32 %v81, %v93
    %v104 = vadd.f32 %v82, %v94
    %v105 = vsub.f32 %v103, 1.0
    %v106 = vsub.f32 %v104, 1.0
    %v107 = vmul.f32 %v105, 12.089551
    %v108 = vmul.f32 %v106, 12.089551
    %v109 = vadd.f32 %v107, 355.1434
    %v110 = vadd.f32 %v108, 355.1434
    %v111 = vmul.f32 %v109, %v105
    %v112 = vmul.f32 %v110, %v106
    %v113 = vadd.f32 %v111, 2521.6472
    %v114 = vadd.f32 %v112, 2521.6472
    %v115 = vmul.f32 %v113, %v105
    %v116 = vmul.f32 %v114, %v106
    %v117 = vadd.f32 %v115, 6237.7153
    %v118 = vadd.f32 %v116, 6237.7153
    %v119 = vadd.f32 %v105, 10.0
    %v120 = vadd.f32 %v106, 10.0
    %v121 = vmul.f32 %v119, %v105
    %v122 = vmul.f32 %v120, %v106
    %v123 = vadd.f32 %v121, 35.0
    %v124 = vadd.f32 %v122, 35.0
    %v125 = vmul.f32 %v123, %v105
    %v126 = vmul.f32 %v124, %v106
    %v127 = vadd.f32 %v125, 50.0
    %v128 = vadd.f32 %v126, 50.0
    %v129 = vmul.f32 %v127, %v105
    %v130 = vmul.f32 %v128, %v106
    %v131 = vadd.f32 %v129, 24.0
    %v132 = vadd.f32 %v130, 24.0
    %v133 = vrcp.pop %v131
    %v134 = vrcp.pop %v132
    %v135 = vmul.f32 %v131, %v133
    %v136 = vmul.f32 %v132, %v134
    %v137 = vsub.f32 2.0, %v135
    %v138 = vsub.f32 2.0, %v136
    %v139 = vmul.f32 %v133, %v137
    %v140 = vmul.f32 %v134, %v138
    %v141 = vmul.f32 %v117, %v139
    %v142 = vmul.f32 %v118, %v140
    %v143 = vadd.f32 %v141, 1.0
    %v144 = vadd.f32 %v142, 1.0
    %v145 = vmul.f32 %v105, 12.368782
    %v146 = vmul.f32 %v106, 12.368782
    %v147 = vadd.f32 %v145, 259.88297
    %v148 = vadd.f32 %v146, 259.88297
    %v149 = vmul.f32 %v147, %v105
    %v150 = vmul.f32 %v148, %v106
    %v151 = vadd.f32 %v149, 1807.9205
    %v152 = vadd.f32 %v150, 1807.9205
    %v153 = vmul.f32 %v151, %v105
    %v154 = vmul.f32 %v152, %v106
    %v155 = vadd.f32 %v153, 4163.67
    %v156 = vadd.f32 %v154, 4163.67
    %v157 = vadd.f32 %v105, 26.0
    %v158 = vadd.f32 %v106, 26.0
    %v159 = vmul.f32 %v157, %v105
    %v160 = vmul.f32 %v158, %v106
    %v161 = vadd.f32 %v159, 251.0
    %v162 = vadd.f32 %v160, 251.0
    %v163 = vmul.f32 %v161, %v105
    %v164 = vmul.f32 %v162, %v106
    %v165 = vadd.f32 %v163, 1066.0
    %v166 = vadd.f32 %v164, 1066.0
    %v167 = vmul.f32 %v165, %v105
    %v168 = vmul.f32 %v166, %v106
    %v169 = vadd.f32 %v167, 1680.0
    %v170 = vadd.f32 %v168, 1680.0
    %v171 = vrcp.pop %v169
    %v172 = vrcp.pop %v170
    %v173 = vmul.f32 %v169, %v171
    %v174 = vmul.f32 %v170, %v172
    %v175 = vsub.f32 2.0, %v173
    %v176 = vsub.f32 2.0, %v174
    %v177 = vmul.f32 %v171, %v175
    %v178 = vmul.f32 %v172, %v176
    %v179 = vmul.f32 %v155, %v177
    %v180 = vmul.f32 %v156, %v178
    %v181 = vadd.f32 %v143, %v179
    %v182 = vadd.f32 %v144, %v180
    %v183 = vadd.f32 %v105, 0.5
    %v184 = vadd.f32 %v106, 0.5
    %v185 = vadd.f32 %v105, 7.5
    %v186 = vadd.f32 %v106, 7.5
    %v187 = vlog2.pop %v185
    %v188 = vmul.f32 %v187, 0.6931472
    %v189 = vlog2.pop %v186
    %v190 = vmul.f32 %v189, 0.6931472
    %v191 = vmul.f32 %v183, %v188
    %v192 = vmul.f32 %v184, %v190
    %v193 = vsub.f32 %v93, 1.0
    %v194 = vsub.f32 %v94, 1.0
    %v195 = vmul.f32 %v193, 12.089551
    %v196 = vmul.f32 %v194, 12.089551
    %v197 = vadd.f32 %v195, 355.1434
    %v198 = vadd.f32 %v196, 355.1434
    %v199 = vmul.f32 %v197, %v193
    %v200 = vmul.f32 %v198, %v194
    %v201 = vadd.f32 %v199, 2521.6472
    %v202 = vadd.f32 %v200, 2521.6472
    %v203 = vmul.f32 %v201, %v193
    %v204 = vmul.f32 %v202, %v194
    %v205 = vadd.f32 %v203, 6237.7153
    %v206 = vadd.f32 %v204, 6237.7153
    %v207 = vadd.f32 %v193, 10.0
    %v208 = vadd.f32 %v194, 10.0
    %v209 = vmul.f32 %v207, %v193
    %v210 = vmul.f32 %v208, %v194
    %v211 = vadd.f32 %v209, 35.0
    %v212 = vadd.f32 %v210, 35.0
    %v213 = vmul.f32 %v211, %v193
    %v214 = vmul.f32 %v212, %v194
    %v215 = vadd.f32 %v213, 50.0
    %v216 = vadd.f32 %v214, 50.0
    %v217 = vmul.f32 %v215, %v193
    %v218 = vmul.f32 %v216, %v194
    %v219 = vadd.f32 %v217, 24.0
    %v220 = vadd.f32 %v218, 24.0
    %v221 = vrcp.pop %v219
    %v222 = vrcp.pop %v220
    %v223 = vmul.f32 %v219, %v221
    %v224 = vmul.f32 %v220, %v222
    %v225 = vsub.f32 2.0, %v223
    %v226 = vsub.f32 2.0, %v224
    %v227 = vmul.f32 %v221, %v225
    %v228 = vmul.f32 %v222, %v226
    %v229 = vmul.f32 %v205, %v227
    %v230 = vmul.f32 %v206, %v228
    %v231 = vadd.f32 %v229, 1.0
    %v232 = vadd.f32 %v230, 1.0
    %v233 = vmul.f32 %v193, 12.368782
    %v234 = vmul.f32 %v194, 12.368782
    %v235 = vadd.f32 %v233, 259.88297
    %v236 = vadd.f32 %v234, 259.88297
    %v237 = vmul.f32 %v235, %v193
    %v238 = vmul.f32 %v236, %v194
    %v239 = vadd.f32 %v237, 1807.9205
    %v240 = vadd.f32 %v238, 1807.9205
    %v241 = vmul.f32 %v239, %v193
    %v242 = vmul.f32 %v240, %v194
    %v243 = vadd.f32 %v241, 4163.67
    %v244 = vadd.f32 %v242, 4163.67
    %v245 = vadd.f32 %v193, 26.0
    %v246 = vadd.f32 %v194, 26.0
    %v247 = vmul.f32 %v245, %v193
    %v248 = vmul.f32 %v246, %v194
    %v249 = vadd.f32 %v247, 251.0
    %v250 = vadd.f32 %v248, 251.0
    %v251 = vmul.f32 %v249, %v193
    %v252 = vmul.f32 %v250, %v194
    %v253 = vadd.f32 %v251, 1066.0
    %v254 = vadd.f32 %v252, 1066.0
    %v255 = vmul.f32 %v253, %v193
    %v256 = vmul.f32 %v254, %v194
    %v257 = vadd.f32 %v255, 1680.0
    %v258 = vadd.f32 %v256, 1680.0
    %v259 = vrcp.pop %v257
    %v260 = vrcp.pop %v258
    %v261 = vmul.f32 %v257, %v259
    %v262 = vmul.f32 %v258, %v260
    %v263 = vsub.f32 2.0, %v261
    %v264 = vsub.f32 2.0, %v262
    %v265 = vmul.f32 %v259, %v263
    %v266 = vmul.f32 %v260, %v264
    %v267 = vmul.f32 %v243, %v265
    %v268 = vmul.f32 %v244, %v266
    %v269 = vadd.f32 %v231, %v267
    %v270 = vadd.f32 %v232, %v268
    %v271 = vadd.f32 %v193, 0.5
    %v272 = vadd.f32 %v194, 0.5
    %v273 = vadd.f32 %v193, 7.5
    %v274 = vadd.f32 %v194, 7.5
    %v275 = vlog2.pop %v273
    %v276 = vmul.f32 %v275, 0.6931472
    %v277 = vlog2.pop %v274
    %v278 = vmul.f32 %v277, 0.6931472
    %v279 = vmul.f32 %v271, %v276
    %v280 = vmul.f32 %v272, %v278
    %v281 = vadd.f32 %v81, 1.0
    %v282 = vadd.f32 %v82, 1.0
    %v283 = vsub.f32 %v281, 1.0
    %v284 = vsub.f32 %v282, 1.0
    %v285 = vmul.f32 %v283, 12.089551
    %v286 = vmul.f32 %v284, 12.089551
    %v287 = vadd.f32 %v285, 355.1434
    %v288 = vadd.f32 %v286, 355.1434
    %v289 = vmul.f32 %v287, %v283
    %v290 = vmul.f32 %v288, %v284
    %v291 = vadd.f32 %v289, 2521.6472
    %v292 = vadd.f32 %v290, 2521.6472
    %v293 = vmul.f32 %v291, %v283
    %v294 = vmul.f32 %v292, %v284
    %v295 = vadd.f32 %v293, 6237.7153
    %v296 = vadd.f32 %v294, 6237.7153
    %v297 = vadd.f32 %v283, 10.0
    %v298 = vadd.f32 %v284, 10.0
    %v299 = vmul.f32 %v297, %v283
    %v300 = vmul.f32 %v298, %v284
    %v301 = vadd.f32 %v299, 35.0
    %v302 = vadd.f32 %v300, 35.0
    %v303 = vmul.f32 %v301, %v283
    %v304 = vmul.f32 %v302, %v284
    %v305 = vadd.f32 %v303, 50.0
    %v306 = vadd.f32 %v304, 50.0
    %v307 = vmul.f32 %v305, %v283
    %v308 = vmul.f32 %v306, %v284
    %v309 = vadd.f32 %v307, 24.0
    %v310 = vadd.f32 %v308, 24.0
    %v311 = vrcp.pop %v309
    %v312 = vrcp.pop %v310
    %v313 = vmul.f32 %v309, %v311
    %v314 = vmul.f32 %v310, %v312
    %v315 = vsub.f32 2.0, %v313
    %v316 = vsub.f32 2.0, %v314
    %v317 = vmul.f32 %v311, %v315
    %v318 = vmul.f32 %v312, %v316
    %v319 = vmul.f32 %v295, %v317
    %v320 = vmul.f32 %v296, %v318
    %v321 = vadd.f32 %v319, 1.0
    %v322 = vadd.f32 %v320, 1.0
    %v323 = vmul.f32 %v283, 12.368782
    %v324 = vmul.f32 %v284, 12.368782
    %v325 = vadd.f32 %v323, 259.88297
    %v326 = vadd.f32 %v324, 259.88297
    %v327 = vmul.f32 %v325, %v283
    %v328 = vmul.f32 %v326, %v284
    %v329 = vadd.f32 %v327, 1807.9205
    %v330 = vadd.f32 %v328, 1807.9205
    %v331 = vmul.f32 %v329, %v283
    %v332 = vmul.f32 %v330, %v284
    %v333 = vadd.f32 %v331, 4163.67
    %v334 = vadd.f32 %v332, 4163.67
    %v335 = vadd.f32 %v283, 26.0
    %v336 = vadd.f32 %v284, 26.0
    %v337 = vmul.f32 %v335, %v283
    %v338 = vmul.f32 %v336, %v284
    %v339 = vadd.f32 %v337, 251.0
    %v340 = vadd.f32 %v338, 251.0
    %v341 = vmul.f32 %v339, %v283
    %v342 = vmul.f32 %v340, %v284
    %v343 = vadd.f32 %v341, 1066.0
    %v344 = vadd.f32 %v342, 1066.0
    %v345 = vmul.f32 %v343, %v283
    %v346 = vmul.f32 %v344, %v284
    %v347 = vadd.f32 %v345, 1680.0
    %v348 = vadd.f32 %v346, 1680.0
    %v349 = vrcp.pop %v347
    %v350 = vrcp.pop %v348
    %v351 = vmul.f32 %v347, %v349
    %v352 = vmul.f32 %v348, %v350
    %v353 = vsub.f32 2.0, %v351
    %v354 = vsub.f32 2.0, %v352
    %v355 = vmul.f32 %v349, %v353
    %v356 = vmul.f32 %v350, %v354
    %v357 = vmul.f32 %v333, %v355
    %v358 = vmul.f32 %v334, %v356
    %v359 = vadd.f32 %v321, %v357
    %v360 = vadd.f32 %v322, %v358
    %v361 = vadd.f32 %v283, 0.5
    %v362 = vadd.f32 %v284, 0.5
    %v363 = vadd.f32 %v283, 7.5
    %v364 = vadd.f32 %v284, 7.5
    %v365 = vlog2.pop %v363
    %v366 = vmul.f32 %v365, 0.6931472
    %v367 = vlog2.pop %v364
    %v368 = vmul.f32 %v367, 0.6931472
    %v369 = vmul.f32 %v361, %v366
    %v370 = vmul.f32 %v362, %v368
    %v371 = vmul.f32 %v279, 2.0
    %v372 = vmul.f32 %v280, 2.0
    %v373 = vsub.f32 %v191, %v371
    %v374 = vsub.f32 %v192, %v372
    %v375 = vsub.f32 %v373, %v369
    %v376 = vsub.f32 %v374, %v370
    %v377 = vlog2.pop %v181
    %v378 = vmul.f32 %v377, 0.6931472
    %v379 = vlog2.pop %v182
    %v380 = vmul.f32 %v379, 0.6931472
    %v381 = vadd.f32 %v375, %v378
    %v382 = vadd.f32 %v376, %v380
    %v383 = vmul.f32 %v269, %v269
    %v384 = vmul.f32 %v270, %v270
    %v385 = vmul.f32 %v383, %v359
    %v386 = vmul.f32 %v384, %v360
    %v387 = vlog2.pop %v385
    %v388 = vmul.f32 %v387, 0.6931472
    %v389 = vlog2.pop %v386
    %v390 = vmul.f32 %v389, 0.6931472
    %v391 = vsub.f32 %v381, %v388
    %v392 = vsub.f32 %v382, %v390
    %v393 = vadd.f32 %v391, %v93
    %v394 = vadd.f32 %v392, %v94
    %v395 = vadd.f32 %v393, 12.162123
    %v396 = vadd.f32 %v394, 12.162123
    %v397 = vadd.f32 %v79, 1e-06
    %v398 = vadd.f32 %v80, 1e-06
    %v399 = vmul.f32 %v85, %v397
    %v400 = vmul.f32 %v86, %v398
    %v401 = vlog2.pop %v399
    %v402 = vmul.f32 %v401, 0.6931472
    %v403 = vlog2.pop %v400
    %v404 = vmul.f32 %v403, 0.6931472
    %v405 = vmul.f32 %v81, %v402
    %v406 = vmul.f32 %v82, %v404
    %v407 = vadd.f32 %v395, %v405
    %v408 = vadd.f32 %v396, %v406
    %v409 = vmul.f32 %v103, %v100
    %v410 = vmul.f32 %v104, %v102
    %v411 = vsub.f32 %v407, %v409
    %v412 = vsub.f32 %v408, %v410
    %v413 = vsub.f32 0.0, %v411
    %v414 = vsub.f32 0.0, %v412
    %v415 = vld [vmem:[#allocation8] sm:$0xff]
    %v416 = vadd.f32 %v413, %v414
    %v417 = vadd.f32 %v415, %v416
    %418 = vst [vmem:[#allocation8] sm:$0xff] %v417
    // Predicated region
    $region30: #{tpu_custom_call.1} parent=1 // pred_check
      _
    $region31: #{tpu_custom_call.1} parent=1 // pred_check_branch
      %420 = sbr.rel (0) target = $region33
    $region32: #{tpu_custom_call.1} parent=1 // pred_region
      %s422 = ssub.s32 128, 128
      %423 = vsyncadd [#allocation4], %s422
      %s425 = sshll.u32 [#allocation8], 4
      %s426 = int_to_ptr.vmem [resolvable:$true] %s425
      %428 = dma.vmem_to_hbm [thread:$0]  %s426, 128, %s3, [#allocation4]
    $region33: #{tpu_custom_call.1} parent=1 // pred_fallthru
      _
    // Predicated region
    $region34: #{tpu_custom_call.1} parent=1 // pred_check
      _
    $region35: #{tpu_custom_call.1} parent=1 // pred_check_branch
      %430 = sbr.rel (0) target = $region37
    $region36: #{tpu_custom_call.1} parent=1 // pred_region
      %431 = dma.done [#allocation4], 128
    $region37: #{tpu_custom_call.1} parent=1 // pred_fallthru
      _
    %432 = vsyncpa [#allocation3], 1
    %433 = vsyncpa [#allocation6], 1
    %434 = vsyncpa [#allocation4], 1

</llo_original>
